<compile_context>
chip_gen: v6e
topology: v6e:2x2x1
jax: 0.10.0
libtpu: 0.0.40
codegen_flags: <defaults>
</compile_context>

<pallas_src>
import functools
import math

import jax
import jax.numpy as jnp
import numpy as np
from jax.experimental import pallas as pl
from jax.experimental.pallas import tpu as pltpu


def _sru_kernel(x_ref, p_ref, vec_ref, o_ref, *, tb, c, bias_corr,
                logit_threshold, eps, half):
    x = x_ref[...].astype(jnp.float32)                      # (tb, C, HW)

    # Group-average matrix (includes the 1/n factor), broadcast over the fused
    # batch dim so the group-mix is a single batched MXU matmul per pass.
    p_b = jnp.broadcast_to(p_ref[...][None], (tb, c, c))    # (tb, C, C)
    gw = vec_ref[:, 0:1]                                    # (C, 1) gamma * w_gamma
    bw = vec_ref[:, 1:2]                                    # (C, 1) beta  * w_gamma

    # Pass 1: per-channel sums -> per-(batch, channel) group means.
    s1 = jnp.sum(x, axis=2, keepdims=True)                  # (tb, C, 1)
    mean = jnp.einsum('bck,bkd->bcd', p_b, s1,
                      preferred_element_type=jnp.float32)   # (tb, C, 1)

    # Pass 2: centered second moment -> unbiased std (torch.std, ddof=1).
    xc = x - mean
    s2 = jnp.sum(xc * xc, axis=2, keepdims=True)            # (tb, C, 1)
    var = jnp.einsum('bck,bkd->bcd', p_b, s2,
                     preferred_element_type=jnp.float32) * bias_corr
    std = jnp.sqrt(jnp.maximum(var, 0.0))                   # (tb, C, 1)

    # Gate: sigmoid(((x - mean)/(std + eps)*gamma + beta) * w_gamma) >= t
    #   <=>  (x - mean) * a + beta*w_gamma >= logit(t)   (exact, no EUP work)
    a = gw / (std + eps)                                    # (tb, C, 1)
    info = (xc * a + bw) >= logit_threshold                 # (tb, C, HW) bool

    # Reconstruct: x1 = info*x, x2 = x - x1, cross-add the channel halves.
    x1 = jnp.where(info, x, 0.0)
    x2 = x - x1
    if half % 8 == 0:
        # Sublane-aligned half writes: keeps the cross-half swap off the XLU.
        o_ref[:, :half, :] = (x1[:, :half, :] + x2[:, half:, :]).astype(o_ref.dtype)
        o_ref[:, half:, :] = (x1[:, half:, :] + x2[:, :half, :]).astype(o_ref.dtype)
    else:
        o_ref[...] = (x1 + pltpu.roll(x2, shift=half, axis=1)).astype(o_ref.dtype)


def _vmem_capacity_bytes():
    try:
        cap = getattr(pltpu.get_tpu_info(), "vmem_capacity_bytes", None)
        if cap:
            return int(cap)
    except Exception:
        pass
    return 64 << 20          # conservative default: v7x per-TensorCore VMEM


def sru_forward(x, gamma, beta, *, group_num=16, eps=1e-10, gate_threshold=0.5):
    """x: (N, C, H, W), gamma/beta: (C, 1, 1) -> (N, C, H, W), same dtype as x."""
    N, C, H, W = x.shape
    assert C >= group_num and C % group_num == 0 and C % 2 == 0
    assert 0.0 < gate_threshold < 1.0
    HW = H * W
    cpg = C // group_num
    n_elem = cpg * HW
    half = C // 2

    # No spatial padding / output slicing: the kernel block uses the
    # full-extent (C, HW) dims directly.
    x3 = x.reshape(N, C, HW)

    g2 = gamma.reshape(C, 1).astype(jnp.float32)
    b2 = beta.reshape(C, 1).astype(jnp.float32)
    w_gamma = g2 / jnp.sum(g2)
    # Packed per-channel constants: col 0 = gamma*w_gamma, col 1 = beta*w_gamma.
    vec = jnp.concatenate([g2 * w_gamma, b2 * w_gamma], axis=1)        # (C, 2)

    # P[c, c'] = 1/n_elem if channels c and c' share a group, else 0.
    cidx = np.arange(C)
    same = ((cidx[:, None] // cpg) == (cidx[None, :] // cpg)).astype(np.float32)
    P = jnp.asarray(same / float(n_elem))

    logit_t = float(math.log(gate_threshold / (1.0 - gate_threshold)))
    bias_corr = float(n_elem) / float(max(n_elem - 1, 1))   # torch.std ddof=1

    # --- generation-aware block sizing ------------------------------------
    vmem_cap = _vmem_capacity_bytes()
    # Leave headroom for Mosaic internal scratch: ~45 MiB on 64 MiB parts,
    # ~90 MiB on 128 MiB parts.
    vmem_budget = max(16 << 20, min(int(vmem_cap * 0.70), vmem_cap - (16 << 20)))
    slab_bytes = C * HW * 4            # f32 working footprint of one batch slab
    # 2x double-buffered (in + out) blocks plus a few block-sized f32 temps in
    # the kernel body -> keep one block to ~1/10 of the scoped VMEM budget.
    block_cap = min(8 << 20, vmem_budget // 10)

    tb = max(1, min(N, block_cap // slab_bytes if slab_bytes <= block_cap else 1))
    if N >= 2:
        tb = min(tb, max(1, N // 2))   # grid >= 2 -> v7x megacore splits batches
    grid0 = pl.cdiv(N, tb)             # N need not be divisible by tb
    # TODO(synk): when a single (C, HW) slab exceeds block_cap, add an HW-tiled
    # two-pass path (VMEM-scratch stats accumulation + normalize/gate pass) so
    # very large H*W still fits v7x's 64 MiB VMEM.

    kernel = functools.partial(_sru_kernel, tb=tb, c=C, bias_corr=bias_corr,
                               logit_threshold=logit_t, eps=float(eps),
                               half=half)

    out = pl.pallas_call(
        kernel,
        out_shape=jax.ShapeDtypeStruct((N, C, HW), x.dtype),
        grid_spec=pltpu.PrefetchScalarGridSpec(
            num_scalar_prefetch=0,
            grid=(grid0,),
            in_specs=[
                pl.BlockSpec((tb, C, HW), lambda n: (n, 0, 0)),
                pl.BlockSpec((C, C), lambda n: (0, 0)),
                pl.BlockSpec((C, 2), lambda n: (0, 0)),
            ],
            out_specs=pl.BlockSpec((tb, C, HW), lambda n: (n, 0, 0)),
        ),
        compiler_params=pltpu.CompilerParams(
            dimension_semantics=("parallel",),
            vmem_limit_bytes=int(vmem_budget)),
    )(x3, P, vec)

    return out.reshape(N, C, H, W)


def sru_reference(x, gamma, beta, *, group_num=16, eps=1e-10,
                  gate_threshold=0.5):
    """Pure-JAX reference mirroring the PyTorch module."""
    N, C, H, W = x.shape
    xg = x.reshape(N, group_num, -1)
    mean = xg.mean(axis=2, keepdims=True)
    std = xg.std(axis=2, keepdims=True, ddof=1)
    xn = ((xg - mean) / (std + eps)).reshape(N, C, H, W)
    gn_x = xn * gamma + beta
    w_gamma = gamma / jnp.sum(gamma)
    rew = jax.nn.sigmoid(gn_x * w_gamma)
    info = rew >= gate_threshold
    x1 = jnp.where(info, x, 0.0)
    x2 = jnp.where(info, 0.0, x)
    half = C // 2
    x11, x12 = x1[:, :half], x1[:, half:]
    x21, x22 = x2[:, :half], x2[:, half:]
    return jnp.concatenate([x11 + x22, x12 + x21], axis=1)


if __name__ == "__main__":
    # Small shapes consistent with the module: C >= group_num, divisible by it,
    # and even (for the channel-half split).
    N, C, H, W = 2, 32, 16, 16
    group_num = 16

    key = jax.random.PRNGKey(0)
    kx, kg = jax.random.split(key)
    x = jax.random.normal(kx, (N, C, H, W), dtype=jnp.float32)
    gamma = jax.random.normal(kg, (C, 1, 1), dtype=jnp.float32)  # torch.randn
    beta = jnp.zeros((C, 1, 1), dtype=jnp.float32)               # torch.zeros

    out = jax.block_until_ready(sru_forward(x, gamma, beta, group_num=group_num))
    ref = jax.block_until_ready(sru_reference(x, gamma, beta,
                                              group_num=group_num))

    # Robust check: allow a vanishing fraction of mismatches (the >= threshold
    # gate can flip on elements numerically at the decision boundary).
    diff = np.abs(np.asarray(out) - np.asarray(ref))
    mismatch_frac = float(np.mean(diff > 1e-3))
    assert out.shape == (N, C, H, W)
    assert mismatch_frac < 1e-3, f"mismatch fraction too high: {mismatch_frac}"

    print("KERNEL_OK")
</pallas_src>

<mosaic_0001>
module attributes {stable_mosaic.version = 11 : i64} {
  func.func @_sru_kernel(%arg0: i32, %arg1: memref<1x32x256xf32, #tpu.memory_space<vmem>>, %arg2: memref<32x32xf32, #tpu.memory_space<vmem>>, %arg3: memref<32x2xf32, #tpu.memory_space<vmem>>, %arg4: memref<1x32x256xf32, #tpu.memory_space<vmem>>) attributes {dimension_semantics = [#tpu.dimension_semantics<parallel>], iteration_bounds = array<i64: 2>, scalar_prefetch = 0 : i64, scratch_operands = 0 : i64, tpu.core_type = #tpu.core_type<tc>, window_params = [{transform_indices = @transform_0, window_bounds = array<i64: 1, 32, 256>}, {pipeline_mode = #tpu.pipeline_mode<synchronous>, transform_indices = @transform_1, window_bounds = array<i64: 32, 32>}, {pipeline_mode = #tpu.pipeline_mode<synchronous>, transform_indices = @transform_2, window_bounds = array<i64: 32, 2>}, {transform_indices = @transform_3, window_bounds = array<i64: 1, 32, 256>}]} {
    %c0 = arith.constant 0 : index
    %c0_0 = arith.constant 0 : index
    %c0_1 = arith.constant 0 : index
    %0 = vector.load %arg1[%c0, %c0_0, %c0_1] : memref<1x32x256xf32, #tpu.memory_space<vmem>>, vector<1x32x256xf32>
    %c0_2 = arith.constant 0 : index
    %c0_3 = arith.constant 0 : index
    %1 = vector.load %arg2[%c0_2, %c0_3] : memref<32x32xf32, #tpu.memory_space<vmem>>, vector<32x32xf32>
    %2 = vector.shape_cast %1 : vector<32x32xf32> to vector<1x32x32xf32>
    %c0_4 = arith.constant 0 : index
    %c0_5 = arith.constant 0 : index
    %3 = vector.load %arg3[%c0_4, %c0_5] : memref<32x2xf32, #tpu.memory_space<vmem>>, vector<32x1xf32>
    %c0_6 = arith.constant 0 : index
    %c1 = arith.constant 1 : index
    %4 = vector.load %arg3[%c0_6, %c1] : memref<32x2xf32, #tpu.memory_space<vmem>>, vector<32x1xf32>
    %cst = arith.constant dense<0.000000e+00> : vector<1x32xf32>
    %5 = vector.multi_reduction <add>, %0, %cst [2] : vector<1x32x256xf32> to vector<1x32xf32>
    %6 = vector.shape_cast %5 : vector<1x32xf32> to vector<1x32x1xf32>
    "tpu.trace_start"() <{level = 10 : i32, message = "bck,bkd->bcd"}> : () -> ()
    %cst_7 = arith.constant dense<0.000000e+00> : vector<1x32x1xf32>
    %7 = tpu.matmul %2, %6, %cst_7 {dimension_numbers = #tpu.dot_dimension_numbers<[2], [1], [1], [2], [0, 0, 0, 1, 1, 2], [0], [0]>} : vector<1x32x32xf32>, vector<1x32x1xf32>, vector<1x32x1xf32> -> vector<1x32x1xf32>
    "tpu.trace_stop"() : () -> ()
    %8 = vector.broadcast %7 : vector<1x32x1xf32> to vector<1x32x256xf32>
    %9 = arith.subf %0, %8 : vector<1x32x256xf32>
    %10 = arith.mulf %9, %9 : vector<1x32x256xf32>
    %cst_8 = arith.constant dense<0.000000e+00> : vector<1x32xf32>
    %11 = vector.multi_reduction <add>, %10, %cst_8 [2] : vector<1x32x256xf32> to vector<1x32xf32>
    %12 = vector.shape_cast %11 : vector<1x32xf32> to vector<1x32x1xf32>
    "tpu.trace_start"() <{level = 10 : i32, message = "bck,bkd->bcd"}> : () -> ()
    %cst_9 = arith.constant dense<0.000000e+00> : vector<1x32x1xf32>
    %13 = tpu.matmul %2, %12, %cst_9 {dimension_numbers = #tpu.dot_dimension_numbers<[2], [1], [1], [2], [0, 0, 0, 1, 1, 2], [0], [0]>} : vector<1x32x32xf32>, vector<1x32x1xf32>, vector<1x32x1xf32> -> vector<1x32x1xf32>
    "tpu.trace_stop"() : () -> ()
    %cst_10 = arith.constant 1.00195694 : f32
    %14 = vector.broadcast %cst_10 : f32 to vector<1x32x1xf32>
    %15 = arith.mulf %13, %14 : vector<1x32x1xf32>
    %cst_11 = arith.constant 0.000000e+00 : f32
    %16 = vector.broadcast %cst_11 : f32 to vector<1x32x1xf32>
    %17 = arith.maximumf %15, %16 : vector<1x32x1xf32>
    %18 = math.sqrt %17 : vector<1x32x1xf32>
    %cst_12 = arith.constant 1.000000e-10 : f32
    %19 = vector.broadcast %cst_12 : f32 to vector<1x32x1xf32>
    %20 = arith.addf %18, %19 : vector<1x32x1xf32>
    %21 = vector.shape_cast %3 : vector<32x1xf32> to vector<1x32x1xf32>
    %22 = arith.divf %21, %20 : vector<1x32x1xf32>
    %23 = vector.broadcast %22 : vector<1x32x1xf32> to vector<1x32x256xf32>
    %24 = arith.mulf %9, %23 : vector<1x32x256xf32>
    %25 = vector.shape_cast %4 : vector<32x1xf32> to vector<1x32x1xf32>
    %26 = vector.broadcast %25 : vector<1x32x1xf32> to vector<1x32x256xf32>
    %27 = arith.addf %24, %26 : vector<1x32x256xf32>
    %cst_13 = arith.constant 0.000000e+00 : f32
    %28 = vector.broadcast %cst_13 : f32 to vector<1x32x256xf32>
    %29 = arith.cmpf oge, %27, %28 : vector<1x32x256xf32>
    %cst_14 = arith.constant 0.000000e+00 : f32
    %30 = vector.broadcast %cst_14 : f32 to vector<1x32x256xf32>
    %31 = arith.select %29, %0, %30 : vector<1x32x256xi1>, vector<1x32x256xf32>
    %32 = arith.subf %0, %31 : vector<1x32x256xf32>
    %33 = vector.extract_strided_slice %31 {offsets = [0, 0, 0], sizes = [1, 16, 256], strides = [1, 1, 1]} : vector<1x32x256xf32> to vector<1x16x256xf32>
    %34 = vector.extract_strided_slice %32 {offsets = [0, 16, 0], sizes = [1, 16, 256], strides = [1, 1, 1]} : vector<1x32x256xf32> to vector<1x16x256xf32>
    %35 = arith.addf %33, %34 : vector<1x16x256xf32>
    %c0_15 = arith.constant 0 : index
    %c0_16 = arith.constant 0 : index
    %c0_17 = arith.constant 0 : index
    %36 = vector.load %arg4[%c0_15, %c0_16, %c0_17] : memref<1x32x256xf32, #tpu.memory_space<vmem>>, vector<1x16x256xf32>
    tpu.vector_store %arg4[%c0_15, %c0_16, %c0_17], %35 {strides = array<i32>} : memref<1x32x256xf32, #tpu.memory_space<vmem>>, vector<1x16x256xf32>,
    %37 = vector.extract_strided_slice %31 {offsets = [0, 16, 0], sizes = [1, 16, 256], strides = [1, 1, 1]} : vector<1x32x256xf32> to vector<1x16x256xf32>
    %38 = vector.extract_strided_slice %32 {offsets = [0, 0, 0], sizes = [1, 16, 256], strides = [1, 1, 1]} : vector<1x32x256xf32> to vector<1x16x256xf32>
    %39 = arith.addf %37, %38 : vector<1x16x256xf32>
    %c0_18 = arith.constant 0 : index
    %c16 = arith.constant 16 : index
    %c0_19 = arith.constant 0 : index
    %40 = vector.load %arg4[%c0_18, %c16, %c0_19] : memref<1x32x256xf32, #tpu.memory_space<vmem>>, vector<1x16x256xf32>
    tpu.vector_store %arg4[%c0_18, %c16, %c0_19], %39 {strides = array<i32>} : memref<1x32x256xf32, #tpu.memory_space<vmem>>, vector<1x16x256xf32>,
    return
  }
  func.func @transform_0(%arg0: i32) -> (i32, i32, i32) {
    %c0_i32 = arith.constant 0 : i32
    %c0_i32_0 = arith.constant 0 : i32
    %c0_i32_1 = arith.constant 0 : i32
    return %arg0, %c0_i32, %c0_i32_0 : i32, i32, i32
  }
  func.func @transform_1(%arg0: i32) -> (i32, i32) {
    %c0_i32 = arith.constant 0 : i32
    %c0_i32_0 = arith.constant 0 : i32
    %c0_i32_1 = arith.constant 0 : i32
    return %c0_i32, %c0_i32_0 : i32, i32
  }
  func.func @transform_2(%arg0: i32) -> (i32, i32) {
    %c0_i32 = arith.constant 0 : i32
    %c0_i32_0 = arith.constant 0 : i32
    %c0_i32_1 = arith.constant 0 : i32
    return %c0_i32, %c0_i32_0 : i32, i32
  }
  func.func @transform_3(%arg0: i32) -> (i32, i32, i32) {
    %c0_i32 = arith.constant 0 : i32
    %c0_i32_0 = arith.constant 0 : i32
    %c0_i32_1 = arith.constant 0 : i32
    return %arg0, %c0_i32, %c0_i32_0 : i32, i32, i32
  }
}

</mosaic_0001>

<llo_original>
// kernel: tpu_custom_call.1
$region0: #{tpu_custom_call.1}
  #allocation0 [shape = 'u32[]', space=smem, size = 0x4, offset = 0x4, fixed_abs, tag = 'smem constant byte address 0x4 - core index']
  #allocation1 [shape = 'u32[144,128]{1,0:T(1,128)}', space=vmem, size = 0x12000, scoped, tag = 'internal scratch']
  %s0 = inlined_call_operand.hbm [shape: f32[2,32,256], index: 0, kind: input, shape index: {}]
  %s1 = inlined_call_operand.vmem [shape: f32[32,32], index: 1, kind: input, shape index: {}]
  %s2 = inlined_call_operand.vmem [shape: f32[32,2], index: 2, kind: input, shape index: {}]
  %s3 = inlined_call_operand.hbm [shape: f32[2,32,256], index: 3, kind: output, shape index: {}]
  %s4 = sld [smem:[#allocation0]]
  $region49: #{tpu_custom_call.1} parent=0
    _
  %s6 = ssub.s32 1, %s4
  %s7 = scalar_select 0, %s6, %s4
  $region1: #{tpu_custom_call.1} parent=0
    #allocation2 [shape = 'u8[65536]{0}', space=vmem, size = 0x10000, scoped, tag = 'input window, operand 0']
    #allocation3 [shape = 's32[2]{0}', space=sflag, size = 0x8, scoped, tag = 'scoped memory for tpu_custom_call.1']
    #allocation4 [shape = 's32[2]{0}', space=sflag, size = 0x8, scoped, tag = 'scoped memory for tpu_custom_call.1']
    #allocation5 [shape = 'u8[65536]{0}', space=vmem, size = 0x10000, scoped, tag = 'output window, operand 0']
    %8 = vsyncpa [#allocation3], 0
    %s9 = scalar_lea.sflag [#allocation3], 1
    %10 = vsyncpa %s9, 0
    %11 = vsyncpa [#allocation4], 0
    %s12 = scalar_lea.sflag [#allocation4], 1
    %13 = vsyncpa %s12, 0
    loop: start=0, step=1, limit=4
    $region2: #{tpu_custom_call.1} parent=1 // loop_pre_header
      _
    $region3: #{tpu_custom_call.1} parent=1 // loop_header
      %s15 = sphi 0, %s19
      %p16 = scmp.ge.s32.totalorder %s15, 4
      %s25 = sphi 0, %s27
      %s28 = sphi 0, %s25
      %s29 = sphi 0, %s28
      %s45 = sphi 0, %s29
      %s49 = sphi 0, %s49
      %s51 = sphi 0, %s49
      %s52 = sphi 0, %s51
      %s66 = sphi 0, %s52
      %s70 = sphi 0, %s70
      %s72 = sphi 0, %s70
      %s73 = sphi 0, %s72
      %s87 = sphi 0, %s73
      %s93 = sphi 0, %s95
      %s96 = sphi 0, %s93
      %s97 = sphi 0, %s96
      %s113 = sphi 0, %s97
    $region4: #{tpu_custom_call.1} parent=1 // loop_header_branch
      %18 = sbr.rel (%p16) target = $region8
    $region5: #{tpu_custom_call.1} parent=1 // loop_body
      %s20 = ssub.s32 %s15, 1
      %s21 = ssub.s32 %s15, 2
      %s22 = sadd.s32 %s15, 1
      %s23 = ssub.s32 %s15, %s22
      %p24 = scmp.eq.s32.totalorder %s23, 0
      %s26 = sadd.s32 %s25, 1
      %s27 = scalar_select %p24, %s25, %s26
      %p30 = pneg %p24
      %p31 = scmp.eq.s32.totalorder %s15, 1
      %p32 = por %p30, %p31
      %p33 = scmp.ne.s32.totalorder %s25, %s28
      %p34 = scmp.eq.s32.totalorder %s15, 0
      %p35 = por %p33, %p34
      %p36 = scmp.ne.s32.totalorder %s25, %s28
      %p37 = scmp.eq.s32.totalorder %s20, 1
      %p38 = por %p36, %p37
      %p39 = scmp.ne.s32.totalorder %s28, %s29
      %p40 = scmp.eq.s32.totalorder %s20, 0
      %p41 = por %p39, %p40
      %p42 = scmp.ne.s32.totalorder %s28, %s29
      %p43 = scmp.eq.s32.totalorder %s21, 1
      %p44 = por %p42, %p43
      %p46 = scmp.ne.s32.totalorder %s29, %s45
      %p47 = scmp.eq.s32.totalorder %s21, 0
      %p48 = por %p46, %p47
      %s50 = sadd.s32 %s49, 1
      %p53 = scmp.eq.s32.totalorder %s15, 1
      %p54 = scmp.ne.s32.totalorder %s49, %s51
      %p55 = scmp.eq.s32.totalorder %s15, 0
      %p56 = por %p54, %p55
      %p57 = scmp.ne.s32.totalorder %s49, %s51
      %p58 = scmp.eq.s32.totalorder %s20, 1
      %p59 = por %p57, %p58
      %p60 = scmp.ne.s32.totalorder %s51, %s52
      %p61 = scmp.eq.s32.totalorder %s20, 0
      %p62 = por %p60, %p61
      %p63 = scmp.ne.s32.totalorder %s51, %s52
      %p64 = scmp.eq.s32.totalorder %s21, 1
      %p65 = por %p63, %p64
      %p67 = scmp.ne.s32.totalorder %s52, %s66
      %p68 = scmp.eq.s32.totalorder %s21, 0
      %p69 = por %p67, %p68
      %s71 = sadd.s32 %s70, 1
      %p74 = scmp.eq.s32.totalorder %s15, 1
      %p75 = scmp.ne.s32.totalorder %s70, %s72
      %p76 = scmp.eq.s32.totalorder %s15, 0
      %p77 = por %p75, %p76
      %p78 = scmp.ne.s32.totalorder %s70, %s72
      %p79 = scmp.eq.s32.totalorder %s20, 1
      %p80 = por %p78, %p79
      %p81 = scmp.ne.s32.totalorder %s72, %s73
      %p82 = scmp.eq.s32.totalorder %s20, 0
      %p83 = por %p81, %p82
      %p84 = scmp.ne.s32.totalorder %s72, %s73
      %p85 = scmp.eq.s32.totalorder %s21, 1
      %p86 = por %p84, %p85
      %p88 = scmp.ne.s32.totalorder %s73, %s87
      %p89 = scmp.eq.s32.totalorder %s21, 0
      %p90 = por %p88, %p89
      %s91 = ssub.s32 %s15, %s22
      %p92 = scmp.eq.s32.totalorder %s91, 0
      %s94 = sadd.s32 %s93, 1
      %s95 = scalar_select %p92, %s93, %s94
      %p98 = pneg %p92
      %p99 = scmp.eq.s32.totalorder %s15, 1
      %p100 = por %p98, %p99
      %p101 = scmp.ne.s32.totalorder %s93, %s96
      %p102 = scmp.eq.s32.totalorder %s15, 0
      %p103 = por %p101, %p102
      %p104 = scmp.ne.s32.totalorder %s93, %s96
      %p105 = scmp.eq.s32.totalorder %s20, 1
      %p106 = por %p104, %p105
      %p107 = scmp.ne.s32.totalorder %s96, %s97
      %p108 = scmp.eq.s32.totalorder %s20, 0
      %p109 = por %p107, %p108
      %p110 = scmp.ne.s32.totalorder %s96, %s97
      %p111 = scmp.eq.s32.totalorder %s21, 1
      %p112 = por %p110, %p111
      %p114 = scmp.ne.s32.totalorder %s97, %s113
      %p115 = scmp.eq.s32.totalorder %s21, 0
      %p116 = por %p114, %p115
      %p117 = scmp.le.s32.totalorder 1, %s15
      %p118 = scmp.lt.s32.totalorder %s15, 3
      %p119 = pnand %p117, %p118
      %p120 = pneg %p119
      // Predicated region
      $region9: #{tpu_custom_call.1} parent=5 // pred_check
        _
      $region10: #{tpu_custom_call.1} parent=5 // pred_check_branch
        %122 = sbr.rel (%p119) target = $region12
      $region11: #{tpu_custom_call.1} parent=5 // pred_region
        %s123 = ssub.s32 %s15, 1
        // Predicated region
        $region13: #{tpu_custom_call.1} parent=11 // pred_check
          %p124 = pneg %p62
        $region14: #{tpu_custom_call.1} parent=11 // pred_check_branch
          %126 = sbr.rel (%p124) target = $region16
        $region15: #{tpu_custom_call.1} parent=11 // pred_region
          _
        $region16: #{tpu_custom_call.1} parent=11 // pred_fallthru
          _
        // Predicated region
        $region17: #{tpu_custom_call.1} parent=11 // pred_check
          %p127 = pneg %p83
        $region18: #{tpu_custom_call.1} parent=11 // pred_check_branch
          %129 = sbr.rel (%p127) target = $region20
        $region19: #{tpu_custom_call.1} parent=11 // pred_region
          _
        $region20: #{tpu_custom_call.1} parent=11 // pred_fallthru
          _
      $region12: #{tpu_custom_call.1} parent=5 // pred_fallthru
        _
      %p130 = scmp.lt.s32.totalorder %s15, 2
      // Predicated region
      $region21: #{tpu_custom_call.1} parent=5 // pred_check
        %p131 = pneg %p130
      $region22: #{tpu_custom_call.1} parent=5 // pred_check_branch
        %133 = sbr.rel (%p131) target = $region24
      $region23: #{tpu_custom_call.1} parent=5 // pred_region
        // Predicated region
        $region25: #{tpu_custom_call.1} parent=23 // pred_check
          %p134 = pneg %p35
        $region26: #{tpu_custom_call.1} parent=23 // pred_check_branch
          %136 = sbr.rel (%p134) target = $region28
        $region27: #{tpu_custom_call.1} parent=23 // pred_region
          %s137 = sand.u32 %s25, 1
          %s138 = scalar_lea.sflag [#allocation3], %s137
          %s139 = sand.u32 %s25, 1
          %s140 = smul.addr %s139, 64
          %s141 = scalar_lea.vmem [#allocation2], %s140
          %s143 = ssub.s32 1024, 1024
          %144 = vsyncadd %s138, %s143
          %s145 = smul.addr %s15, 8
          %s146 = smul.addr %s145, 128
          %s147 = scalar_lea.hbm %s0, %s146
          %s148 = sshll.u32 %s141, 4
          %s149 = int_to_ptr.vmem [resolvable:$true] %s148
          %154 = dma.hbm_to_vmem [thread:$0]  %s147, 1024, %s149, %s138, 256, 256, 16
        $region28: #{tpu_custom_call.1} parent=23 // pred_fallthru
          _
      $region24: #{tpu_custom_call.1} parent=5 // pred_fallthru
        _
      %p155 = scmp.le.s32.totalorder 1, %s15
      %p156 = scmp.lt.s32.totalorder %s15, 3
      %p157 = pnand %p155, %p156
      %p158 = pneg %p157
      // Predicated region
      $region29: #{tpu_custom_call.1} parent=5 // pred_check
        _
      $region30: #{tpu_custom_call.1} parent=5 // pred_check_branch
        %160 = sbr.rel (%p157) target = $region32
      $region31: #{tpu_custom_call.1} parent=5 // pred_region
        %s161 = ssub.s32 %s15, 1
        %s162 = sand.u32 %s28, 1
        %s163 = scalar_lea.sflag [#allocation3], %s162
        %s164 = sand.u32 %s28, 1
        %s165 = smul.addr %s164, 64
        %s166 = scalar_lea.vmem [#allocation2], %s165
        // Predicated region
        $region33: #{tpu_custom_call.1} parent=31 // pred_check
          %p167 = pneg %p41
        $region34: #{tpu_custom_call.1} parent=31 // pred_check_branch
          %169 = sbr.rel (%p167) target = $region36
        $region35: #{tpu_custom_call.1} parent=31 // pred_region
          %170 = dma.done %s163, 1024
        $region36: #{tpu_custom_call.1} parent=31 // pred_fallthru
          _
        %s171 = sand.u32 %s28, 1
        %s172 = scalar_lea.sflag [#allocation3], %s171
        %s173 = sand.u32 %s28, 1
        %s174 = smul.addr %s173, 64
        %s175 = scalar_lea.vmem [#allocation2], %s174
        %p176 = pneg %p41
        %p177 = pneg %p38
        %p178 = pneg %p62
        %p179 = pneg %p59
        %p180 = pneg %p83
        %p181 = pneg %p80
        %p182 = pneg %p109
        %p183 = pneg %p106
        %s184 = sand.u32 %s96, 1
        %s185 = scalar_lea.sflag [#allocation4], %s184
        %s186 = sand.u32 %s96, 1
        %s187 = smul.addr %s186, 64
        %s188 = scalar_lea.vmem [#allocation5], %s187
        %v189 = vld [vmem:[%s166] sm:$0xff]
        %v190 = vld [vmem:[%s166 + $0x8] sm:$0xff]
        %v191 = vld [vmem:[%s166 + $0x10] sm:$0xff]
        %v192 = vld [vmem:[%s166 + $0x18] sm:$0xff]
        %v193 = vld [vmem:[%s166 + $0x20] sm:$0xff]
        %v194 = vld [vmem:[%s166 + $0x28] sm:$0xff]
        %v195 = vld [vmem:[%s166 + $0x30] sm:$0xff]
        %v196 = vld [vmem:[%s166 + $0x38] sm:$0xff]
        %v197 = vld [vmem:[%s1] sm:$0xff]
        %v198 = vld [vmem:[%s1 + $0x8] sm:$0xff]
        %v199 = vld [vmem:[%s1 + $0x10] sm:$0xff]
        %v200 = vld [vmem:[%s1 + $0x18] sm:$0xff]
        %v201 = vld [vmem:[%s2] sm:$0xff]
        %v202 = vld [vmem:[%s2 + $0x8] sm:$0xff]
        %v203 = vld [vmem:[%s2 + $0x10] sm:$0xff]
        %v204 = vld [vmem:[%s2 + $0x18] sm:$0xff]
        %v205 = vadd.f32 %v189, %v190
        %206 = vadd.xlane.f32.xlu0 %v205
        %v207 = vpop.xlane.xlu0 %206
        %v208 = vadd.f32 %v191, %v192
        %209 = vadd.xlane.f32.xlu0 %v208
        %v210 = vpop.xlane.xlu0 %209
        %v211 = vadd.f32 %v193, %v194
        %212 = vadd.xlane.f32.xlu0 %v211
        %v213 = vpop.xlane.xlu0 %212
        %v214 = vadd.f32 %v195, %v196
        %215 = vadd.xlane.f32.xlu0 %v214
        %v216 = vpop.xlane.xlu0 %215
        %vm217 = vcmask 261120
        %v219 = vsel %vm217, %v197, 0
        %v222 = vsel %vm217, %v198, 0
        %v225 = vsel %vm217, %v199, 0
        %v228 = vsel %vm217, %v200, 0
        %230 = vmatprep.subr.mxu0 0.0
        %231 = vmatpush1.msra.mxu0 0.0
        %232 = vmatprep.subr.mxu0 0.0
        %233 = vmatpush1.msra.mxu0 0.0
        %234 = vmatprep.subr.mxu0 0.0
        %235 = vmatpush1.msra.mxu0 0.0
        %236 = vmatprep.subr.mxu0 0.0
        %237 = vmatpush1.msra.mxu0 0.0
        %238 = vmatprep.subr.mxu0 0.0
        %239 = vmatpush1.msra.mxu0 0.0
        %240 = vmatprep.subr.mxu0 0.0
        %241 = vmatpush1.msra.mxu0 0.0
        %242 = vmatprep.subr.mxu0 0.0
        %243 = vmatpush1.msra.mxu0 0.0
        %244 = vmatprep.subr.mxu0 0.0
        %245 = vmatpush1.msra.mxu0 0.0
        %246 = vmatprep.subr.mxu0 0.0
        %247 = vmatpush1.msra.mxu0 0.0
        %248 = vmatprep.subr.mxu0 0.0
        %249 = vmatpush1.msra.mxu0 0.0
        %250 = vmatprep.subr.mxu0 0.0
        %251 = vmatpush1.msra.mxu0 0.0
        %252 = vmatprep.subr.mxu0 0.0
        %253 = vmatpush1.msra.mxu0 0.0
        %254 = vmatprep.subr.mxu0 0.0
        %255 = vmatpush1.msra.mxu0 %v216
        %256 = vmatprep.subr.mxu0 0.0
        %257 = vmatpush1.msra.mxu0 %v213
        %258 = vmatprep.subr.mxu0 0.0
        %259 = vmatpush1.msra.mxu0 %v210
        %260 = vmatprep.subr.mxu0 0.0
        %261 = vmatpush1.msra.mxu0 %v207
        %262 = vmatprep.subr.mxu0 0.0
        %263 = vmatpush2.msra.mxu0 0.0
        %264 = vmatprep.subr.mxu0 0.0
        %265 = vmatpush2.msra.mxu0 0.0
        %266 = vmatprep.subr.mxu0 0.0
        %267 = vmatpush2.msra.mxu0 0.0
        %268 = vmatprep.subr.mxu0 0.0
        %269 = vmatpush2.msra.mxu0 0.0
        %270 = vmatprep.subr.mxu0 0.0
        %271 = vmatpush2.msra.mxu0 0.0
        %272 = vmatprep.subr.mxu0 0.0
        %273 = vmatpush2.msra.mxu0 0.0
        %274 = vmatprep.subr.mxu0 0.0
        %275 = vmatpush2.msra.mxu0 0.0
        %276 = vmatprep.subr.mxu0 0.0
        %277 = vmatpush2.msra.mxu0 0.0
        %278 = vmatprep.subr.mxu0 0.0
        %279 = vmatpush2.msra.mxu0 0.0
        %280 = vmatprep.subr.mxu0 0.0
        %281 = vmatpush2.msra.mxu0 0.0
        %282 = vmatprep.subr.mxu0 0.0
        %283 = vmatpush2.msra.mxu0 0.0
        %284 = vmatprep.subr.mxu0 0.0
        %285 = vmatpush2.msra.mxu0 0.0
        %286 = vmatprep.subr.mxu0 0.0
        %287 = vmatpush2.msra.mxu0 0.0
        %288 = vmatprep.subr.mxu0 0.0
        %289 = vmatpush2.msra.mxu0 0.0
        %290 = vmatprep.subr.mxu0 0.0
        %291 = vmatpush2.msra.mxu0 0.0
        %292 = vmatprep.subr.mxu0 0.0
        %293 = vmatpush2.msra.mxu0 0.0
        %294 = vmatprep.mubr.f32.mxu0 0.0
        %295 = vmatmul.mubr.f32.gmra.mxu0 %v219
        %v296 = vpop.f32.mrf.mxu0
        %v297 = vadd.f32 0.0, %v296
        %v298 = vpop.f32.mrf.mxu0
        %299 = vmatprep.mubr.f32.mxu0 0.0
        %300 = vmatmul.mubr.f32.gmra.mxu0 %v222
        %v301 = vpop.f32.mrf.mxu0
        %v302 = vadd.f32 0.0, %v301
        %v303 = vpop.f32.mrf.mxu0
        %304 = vmatprep.mubr.f32.mxu0 0.0
        %305 = vmatmul.mubr.f32.gmra.mxu0 %v225
        %v306 = vpop.f32.mrf.mxu0
        %v307 = vadd.f32 0.0, %v306
        %v308 = vpop.f32.mrf.mxu0
        %309 = vmatprep.mubr.f32.mxu0 0.0
        %310 = vmatmul.mubr.f32.gmra.mxu0 %v228
        %v311 = vpop.f32.mrf.mxu0
        %v312 = vadd.f32 0.0, %v311
        %v313 = vpop.f32.mrf.mxu0
        %314 = vdwg.mxu0
        %316 = vset.pattern.permute.xlu0 0
        %317 = vperm.xlu0 %316, %v297
        %v318 = vpop.permute.xlu0 %317
        %321 = vset.pattern.permute.xlu0 0
        %322 = vperm.xlu0 %321, %v302
        %v323 = vpop.permute.xlu0 %322
        %326 = vset.pattern.permute.xlu0 0
        %327 = vperm.xlu0 %326, %v307
        %v328 = vpop.permute.xlu0 %327
        %331 = vset.pattern.permute.xlu0 0
        %332 = vperm.xlu0 %331, %v312
        %v333 = vpop.permute.xlu0 %332
        %v335 = vsub.f32 %v189, %v318
        %v336 = vsub.f32 %v190, %v318
        %v337 = vsub.f32 %v191, %v323
        %v338 = vsub.f32 %v192, %v323
        %v339 = vsub.f32 %v193, %v328
        %v340 = vsub.f32 %v194, %v328
        %v341 = vsub.f32 %v195, %v333
        %v342 = vsub.f32 %v196, %v333
        %v343 = vmul.f32 %v335, %v335
        %v344 = vmul.f32 %v336, %v336
        %v345 = vmul.f32 %v337, %v337
        %v346 = vmul.f32 %v338, %v338
        %v347 = vmul.f32 %v339, %v339
        %v348 = vmul.f32 %v340, %v340
        %v349 = vmul.f32 %v341, %v341
        %v350 = vmul.f32 %v342, %v342
        %v351 = vadd.f32 %v343, %v344
        %352 = vadd.xlane.f32.xlu0 %v351
        %v353 = vpop.xlane.xlu0 %352
        %v354 = vadd.f32 %v345, %v346
        %355 = vadd.xlane.f32.xlu0 %v354
        %v356 = vpop.xlane.xlu0 %355
        %v357 = vadd.f32 %v347, %v348
        %358 = vadd.xlane.f32.xlu0 %v357
        %v359 = vpop.xlane.xlu0 %358
        %v360 = vadd.f32 %v349, %v350
        %361 = vadd.xlane.f32.xlu0 %v360
        %v362 = vpop.xlane.xlu0 %361
        %363 = vmatprep.subr.mxu0 0.0
        %364 = vmatpush1.msra.mxu0 0.0
        %365 = vmatprep.subr.mxu0 0.0
        %366 = vmatpush1.msra.mxu0 0.0
        %367 = vmatprep.subr.mxu0 0.0
        %368 = vmatpush1.msra.mxu0 0.0
        %369 = vmatprep.subr.mxu0 0.0
        %370 = vmatpush1.msra.mxu0 0.0
        %371 = vmatprep.subr.mxu0 0.0
        %372 = vmatpush1.msra.mxu0 0.0
        %373 = vmatprep.subr.mxu0 0.0
        %374 = vmatpush1.msra.mxu0 0.0
        %375 = vmatprep.subr.mxu0 0.0
        %376 = vmatpush1.msra.mxu0 0.0
        %377 = vmatprep.subr.mxu0 0.0
        %378 = vmatpush1.msra.mxu0 0.0
        %379 = vmatprep.subr.mxu0 0.0
        %380 = vmatpush1.msra.mxu0 0.0
        %381 = vmatprep.subr.mxu0 0.0
        %382 = vmatpush1.msra.mxu0 0.0
        %383 = vmatprep.subr.mxu0 0.0
        %384 = vmatpush1.msra.mxu0 0.0
        %385 = vmatprep.subr.mxu0 0.0
        %386 = vmatpush1.msra.mxu0 0.0
        %387 = vmatprep.subr.mxu0 0.0
        %388 = vmatpush1.msra.mxu0 %v362
        %389 = vmatprep.subr.mxu0 0.0
        %390 = vmatpush1.msra.mxu0 %v359
        %391 = vmatprep.subr.mxu0 0.0
        %392 = vmatpush1.msra.mxu0 %v356
        %393 = vmatprep.subr.mxu0 0.0
        %394 = vmatpush1.msra.mxu0 %v353
        %395 = vmatprep.subr.mxu0 0.0
        %396 = vmatpush2.msra.mxu0 0.0
        %397 = vmatprep.subr.mxu0 0.0
        %398 = vmatpush2.msra.mxu0 0.0
        %399 = vmatprep.subr.mxu0 0.0
        %400 = vmatpush2.msra.mxu0 0.0
        %401 = vmatprep.subr.mxu0 0.0
        %402 = vmatpush2.msra.mxu0 0.0
        %403 = vmatprep.subr.mxu0 0.0
        %404 = vmatpush2.msra.mxu0 0.0
        %405 = vmatprep.subr.mxu0 0.0
        %406 = vmatpush2.msra.mxu0 0.0
        %407 = vmatprep.subr.mxu0 0.0
        %408 = vmatpush2.msra.mxu0 0.0
        %409 = vmatprep.subr.mxu0 0.0
        %410 = vmatpush2.msra.mxu0 0.0
        %411 = vmatprep.subr.mxu0 0.0
        %412 = vmatpush2.msra.mxu0 0.0
        %413 = vmatprep.subr.mxu0 0.0
        %414 = vmatpush2.msra.mxu0 0.0
        %415 = vmatprep.subr.mxu0 0.0
        %416 = vmatpush2.msra.mxu0 0.0
        %417 = vmatprep.subr.mxu0 0.0
        %418 = vmatpush2.msra.mxu0 0.0
        %419 = vmatprep.subr.mxu0 0.0
        %420 = vmatpush2.msra.mxu0 0.0
        %421 = vmatprep.subr.mxu0 0.0
        %422 = vmatpush2.msra.mxu0 0.0
        %423 = vmatprep.subr.mxu0 0.0
        %424 = vmatpush2.msra.mxu0 0.0
        %425 = vmatprep.subr.mxu0 0.0
        %426 = vmatpush2.msra.mxu0 0.0
        %427 = vmatprep.mubr.f32.mxu0 0.0
        %428 = vmatmul.mubr.f32.gmra.mxu0 %v219
        %v429 = vpop.f32.mrf.mxu0
        %v430 = vadd.f32 0.0, %v429
        %v431 = vpop.f32.mrf.mxu0
        %432 = vmatprep.mubr.f32.mxu0 0.0
        %433 = vmatmul.mubr.f32.gmra.mxu0 %v222
        %v434 = vpop.f32.mrf.mxu0
        %v435 = vadd.f32 0.0, %v434
        %v436 = vpop.f32.mrf.mxu0
        %437 = vmatprep.mubr.f32.mxu0 0.0
        %438 = vmatmul.mubr.f32.gmra.mxu0 %v225
        %v439 = vpop.f32.mrf.mxu0
        %v440 = vadd.f32 0.0, %v439
        %v441 = vpop.f32.mrf.mxu0
        %442 = vmatprep.mubr.f32.mxu0 0.0
        %443 = vmatmul.mubr.f32.gmra.mxu0 %v228
        %v444 = vpop.f32.mrf.mxu0
        %v445 = vadd.f32 0.0, %v444
        %v446 = vpop.f32.mrf.mxu0
        %447 = vdwg.mxu0
        %v448 = vmul.f32 %v430, 1.0019569
        %v449 = vmul.f32 %v435, 1.0019569
        %v450 = vmul.f32 %v440, 1.0019569
        %v451 = vmul.f32 %v445, 1.0019569
        %v452 = vmax.f32 %v448, 0.0
        %v453 = vmax.f32 %v449, 0.0
        %v454 = vmax.f32 %v450, 0.0
        %v455 = vmax.f32 %v451, 0.0
        %v456 = vrsqrt.pop %v452
        %v457 = vmul.f32 %v452, %v456
        %vm458 = vcmp.eq.f32.partialorder %v452, inf
        %v459 = vsel %vm458, %v452, %v457
        %vm460 = vcmp.eq.f32.partialorder %v452, 0.0
        %v461 = vand.u32 %v452, 2147483648
        %v462 = vsel %vm460, %v461, %v459
        %v463 = vrsqrt.pop %v453
        %v464 = vmul.f32 %v453, %v463
        %vm465 = vcmp.eq.f32.partialorder %v453, inf
        %v466 = vsel %vm465, %v453, %v464
        %vm467 = vcmp.eq.f32.partialorder %v453, 0.0
        %v468 = vand.u32 %v453, 2147483648
        %v469 = vsel %vm467, %v468, %v466
        %v470 = vrsqrt.pop %v454
        %v471 = vmul.f32 %v454, %v470
        %vm472 = vcmp.eq.f32.partialorder %v454, inf
        %v473 = vsel %vm472, %v454, %v471
        %vm474 = vcmp.eq.f32.partialorder %v454, 0.0
        %v475 = vand.u32 %v454, 2147483648
        %v476 = vsel %vm474, %v475, %v473
        %v477 = vrsqrt.pop %v455
        %v478 = vmul.f32 %v455, %v477
        %vm479 = vcmp.eq.f32.partialorder %v455, inf
        %v480 = vsel %vm479, %v455, %v478
        %vm481 = vcmp.eq.f32.partialorder %v455, 0.0
        %v482 = vand.u32 %v455, 2147483648
        %v483 = vsel %vm481, %v482, %v480
        %v484 = vadd.f32 %v462, 1e-10
        %v485 = vadd.f32 %v469, 1e-10
        %v486 = vadd.f32 %v476, 1e-10
        %v487 = vadd.f32 %v483, 1e-10
        %v488 = vrcp.pop %v484
        %v489 = vmul.f32 %v201, %v488
        %v490 = vrcp.pop %v485
        %v491 = vmul.f32 %v202, %v490
        %v492 = vrcp.pop %v486
        %v493 = vmul.f32 %v203, %v492
        %v494 = vrcp.pop %v487
        %v495 = vmul.f32 %v204, %v494
        %497 = vset.pattern.permute.xlu0 0
        %498 = vperm.xlu0 %497, %v489
        %v499 = vpop.permute.xlu0 %498
        %502 = vset.pattern.permute.xlu0 0
        %503 = vperm.xlu0 %502, %v491
        %v504 = vpop.permute.xlu0 %503
        %507 = vset.pattern.permute.xlu0 0
        %508 = vperm.xlu0 %507, %v493
        %v509 = vpop.permute.xlu0 %508
        %512 = vset.pattern.permute.xlu0 0
        %513 = vperm.xlu0 %512, %v495
        %v514 = vpop.permute.xlu0 %513
        %v516 = vmul.f32 %v335, %v499
        %v517 = vmul.f32 %v336, %v499
        %v518 = vmul.f32 %v337, %v504
        %v519 = vmul.f32 %v338, %v504
        %v520 = vmul.f32 %v339, %v509
        %v521 = vmul.f32 %v340, %v509
        %v522 = vmul.f32 %v341, %v514
        %v523 = vmul.f32 %v342, %v514
        %525 = vset.pattern.permute.xlu0 1
        %526 = vperm.xlu0 %525, %v201
        %v527 = vpop.permute.xlu0 %526
        %530 = vset.pattern.permute.xlu0 1
        %531 = vperm.xlu0 %530, %v202
        %v532 = vpop.permute.xlu0 %531
        %535 = vset.pattern.permute.xlu0 1
        %536 = vperm.xlu0 %535, %v203
        %v537 = vpop.permute.xlu0 %536
        %540 = vset.pattern.permute.xlu0 1
        %541 = vperm.xlu0 %540, %v204
        %v542 = vpop.permute.xlu0 %541
        %v544 = vadd.f32 %v516, %v527
        %v545 = vadd.f32 %v517, %v527
        %v546 = vadd.f32 %v518, %v532
        %v547 = vadd.f32 %v519, %v532
        %v548 = vadd.f32 %v520, %v537
        %v549 = vadd.f32 %v521, %v537
        %v550 = vadd.f32 %v522, %v542
        %v551 = vadd.f32 %v523, %v542
        %vm552 = vcmp.ge.f32.partialorder %v544, 0.0
        %vm553 = vcmp.ge.f32.partialorder %v545, 0.0
        %vm554 = vcmp.ge.f32.partialorder %v546, 0.0
        %vm555 = vcmp.ge.f32.partialorder %v547, 0.0
        %vm556 = vcmp.ge.f32.partialorder %v548, 0.0
        %vm557 = vcmp.ge.f32.partialorder %v549, 0.0
        %vm558 = vcmp.ge.f32.partialorder %v550, 0.0
        %vm559 = vcmp.ge.f32.partialorder %v551, 0.0
        %v560 = vsel %vm552, %v189, 0.0
        %v561 = vsel %vm553, %v190, 0.0
        %v562 = vsel %vm554, %v191, 0.0
        %v563 = vsel %vm555, %v192, 0.0
        %v564 = vsel %vm556, %v193, 0.0
        %v565 = vsel %vm557, %v194, 0.0
        %v566 = vsel %vm558, %v195, 0.0
        %v567 = vsel %vm559, %v196, 0.0
        %v568 = vsub.f32 %v189, %v560
        %v569 = vsub.f32 %v190, %v561
        %v570 = vsub.f32 %v191, %v562
        %v571 = vsub.f32 %v192, %v563
        %v572 = vsub.f32 %v193, %v564
        %v573 = vsub.f32 %v194, %v565
        %v574 = vsub.f32 %v195, %v566
        %v575 = vsub.f32 %v196, %v567
        %v576 = vadd.f32 %v560, %v572
        %v577 = vadd.f32 %v561, %v573
        %v578 = vadd.f32 %v562, %v574
        %v579 = vadd.f32 %v563, %v575
        %580 = vst [vmem:[%s188] sm:$0xff] %v576
        %581 = vst [vmem:[%s188 + $0x8] sm:$0xff] %v577
        %582 = vst [vmem:[%s188 + $0x10] sm:$0xff] %v578
        %583 = vst [vmem:[%s188 + $0x18] sm:$0xff] %v579
        %v584 = vadd.f32 %v564, %v568
        %v585 = vadd.f32 %v565, %v569
        %v586 = vadd.f32 %v566, %v570
        %v587 = vadd.f32 %v567, %v571
        %588 = vst [vmem:[%s188 + $0x20] sm:$0xff] %v584
        %589 = vst [vmem:[%s188 + $0x28] sm:$0xff] %v585
        %590 = vst [vmem:[%s188 + $0x30] sm:$0xff] %v586
        %591 = vst [vmem:[%s188 + $0x38] sm:$0xff] %v587
        %s592 = sand.u32 %s96, 1
        %s593 = scalar_lea.sflag [#allocation4], %s592
        %s594 = sand.u32 %s96, 1
        %s595 = smul.addr %s594, 64
        %s596 = scalar_lea.vmem [#allocation5], %s595
        // Predicated region
        $region37: #{tpu_custom_call.1} parent=31 // pred_check
          %p597 = pneg %p106
        $region38: #{tpu_custom_call.1} parent=31 // pred_check_branch
          %599 = sbr.rel (%p597) target = $region40
        $region39: #{tpu_custom_call.1} parent=31 // pred_region
          %s601 = ssub.s32 1024, 1024
          %602 = vsyncadd %s593, %s601
          %s603 = smul.addr %s20, 8
          %s604 = smul.addr %s603, 128
          %s605 = scalar_lea.hbm %s3, %s604
          %s606 = sshll.u32 %s596, 4
          %s607 = int_to_ptr.vmem [resolvable:$true] %s606
          %612 = dma.vmem_to_hbm [thread:$0]  %s607, 1024, %s605, %s593, 256, 256, 16
        $region40: #{tpu_custom_call.1} parent=31 // pred_fallthru
          _
      $region32: #{tpu_custom_call.1} parent=5 // pred_fallthru
        _
      %p613 = scmp.le.s32.totalorder 2, %s15
      // Predicated region
      $region41: #{tpu_custom_call.1} parent=5 // pred_check
        %p614 = pneg %p613
      $region42: #{tpu_custom_call.1} parent=5 // pred_check_branch
        %616 = sbr.rel (%p614) target = $region44
      $region43: #{tpu_custom_call.1} parent=5 // pred_region
        %s617 = ssub.s32 %s15, 2
        // Predicated region
        $region45: #{tpu_custom_call.1} parent=43 // pred_check
          %p618 = pneg %p112
        $region46: #{tpu_custom_call.1} parent=43 // pred_check_branch
          %620 = sbr.rel (%p618) target = $region48
        $region47: #{tpu_custom_call.1} parent=43 // pred_region
          %s621 = sand.u32 %s97, 1
          %s622 = scalar_lea.sflag [#allocation4], %s621
          %s623 = sand.u32 %s97, 1
          %s624 = smul.addr %s623, 64
          %s625 = scalar_lea.vmem [#allocation5], %s624
          %626 = dma.done %s622, 1024
        $region48: #{tpu_custom_call.1} parent=43 // pred_fallthru
          _
      $region44: #{tpu_custom_call.1} parent=5 // pred_fallthru
        _
    $region6: #{tpu_custom_call.1} parent=1 // loop_footer
      %s19 = sadd.s32 1, %s15
    $region7: #{tpu_custom_call.1} parent=1 // loop_footer_branch
      %14 = sbr.rel target = $region3
    $region8: #{tpu_custom_call.1} parent=1 // loop_exit
      _
    %627 = vsyncpa [#allocation3], 1
    %s628 = scalar_lea.sflag [#allocation3], 1
    %629 = vsyncpa %s628, 1
    %630 = vsyncpa [#allocation4], 1
    %s631 = scalar_lea.sflag [#allocation4], 1
    %632 = vsyncpa %s631, 1

</llo_original>
